<compile_context>
chip_gen: v6e
topology: v6e:2x2x1
jax: 0.10.0
libtpu: 0.0.40
codegen_flags: <defaults>
</compile_context>

<pallas_src>
import functools

import jax
import jax.numpy as jnp
from jax.experimental import pallas as pl
from jax.experimental.pallas import tpu as pltpu


# ----------------------------------------------------------------------------
# Pallas kernel: polyphase ConvTranspose2d (stride=2, k=3, p=1)
# ----------------------------------------------------------------------------
def _polyphase_convt_kernel(x_ref, a_ref, b_ref, o_ref, *, hw, shifts):
    # x_ref: (1, C_in, XLEN)     flattened input plane + zero tail pad (lanes)
    # a_ref: (4, 4*C_out, C_in)  per-shift packed transposed-conv weights
    # b_ref: (4*C_out, 1)        bias tiled over the 4 output phases
    # o_ref: (1, 4*C_out, HW)    4 output phase planes, spatial on lanes
    x = x_ref[0]                                   # (C_in, XLEN), stays in vregs
    acc = None
    for s_idx, s in enumerate(shifts):             # 4 shifts, unrolled at trace time
        xs = x[:, s:s + hw]                        # (C_in, HW) lane-shifted slice
        part = jnp.dot(a_ref[s_idx], xs, preferred_element_type=jnp.float32)
        acc = part if acc is None else acc + part  # (4*C_out, HW) f32 in vregs
    acc = acc + b_ref[...]                         # lane-broadcast bias add
    o_ref[0] = acc.astype(o_ref.dtype)             # unmasked lane-dense store


def conv_transpose2d_pallas(x_nchw, weight, bias, *, stride, padding):
    """ConvTranspose2d matching torch.nn.ConvTranspose2d semantics.

    x_nchw : (N, C_in, H, W)
    weight : (C_in, C_out, KH, KW)   (torch ConvTranspose2d weight layout)
    bias   : (C_out,)
    returns: (N, C_out, H_out, W_out)
    """
    n, c_in, h, w = x_nchw.shape
    _, c_out, kh, kw = weight.shape
    out_h = (h - 1) * stride - 2 * padding + kh
    out_w = (w - 1) * stride - 2 * padding + kw

    if not (stride == 2 and kh == 3 and kw == 3 and padding == 1):
        # TODO(synk): Pallas fast path covers the module's default config
        # (kernel_size=3, stride=2, padding=1); other configs fall back to XLA.
        rhs = jnp.transpose(weight[:, :, ::-1, ::-1], (1, 0, 2, 3))
        out = jax.lax.conv_general_dilated(
            x_nchw, rhs, window_strides=(1, 1),
            padding=[(kh - 1 - padding, kh - 1 - padding),
                     (kw - 1 - padding, kw - 1 - padding)],
            lhs_dilation=(stride, stride),
            dimension_numbers=("NCHW", "OIHW", "NCHW"))
        return out + bias[None, :, None, None]

    hw = h * w
    # Tail pad so every (dy, dx)-shifted length-(h*w) slice stays in range;
    # round the flattened length up to a lane multiple (128).
    xlen = ((hw + w + 1 + 127) // 128) * 128
    x_flat = jnp.pad(x_nchw.reshape(n, c_in, hw),
                     ((0, 0), (0, 0), (0, xlen - hw)))

    # Pack the 3x3 transposed-conv weights into a (4, 4*C_out, C_in) stack:
    #   shift s  = 2*dy + dx -> input read  x[a + dy, b + dx]
    #   phase ph = 2*py + px -> output parity (y % 2, x % 2)
    #   A[s, ph*C_out + o, i] = W[i, o, kh(py,dy), kw(px,dx)]   (0 if no tap)
    def _tap(parity, d):
        if parity == 0:
            return 1 if d == 0 else None      # even outputs: center tap only
        return 2 if d == 0 else 0             # odd outputs: tap 2 (d=0), tap 0 (d=1)

    a_stack = jnp.zeros((4, 4 * c_out, c_in), jnp.float32)
    for py in (0, 1):
        for px in (0, 1):
            ph = 2 * py + px
            for dy in (0, 1):
                tkh = _tap(py, dy)
                if tkh is None:
                    continue
                for dx in (0, 1):
                    tkw = _tap(px, dx)
                    if tkw is None:
                        continue
                    s = 2 * dy + dx
                    a_stack = a_stack.at[
                        s, ph * c_out:(ph + 1) * c_out, :
                    ].set(weight[:, :, tkh, tkw].T)
    a_stack = a_stack.astype(x_nchw.dtype)
    b_tiled = jnp.tile(bias, 4).reshape(4 * c_out, 1).astype(x_nchw.dtype)

    shifts = (0, 1, w, w + 1)                      # (dy,dx) in {0,1}^2, flattened
    kernel = functools.partial(_polyphase_convt_kernel, hw=hw, shifts=shifts)

    phases = pl.pallas_call(
        kernel,
        out_shape=jax.ShapeDtypeStruct((n, 4 * c_out, hw), x_nchw.dtype),
        grid=(n,),
        in_specs=[
            pl.BlockSpec((1, c_in, xlen), lambda i: (i, 0, 0)),
            pl.BlockSpec((4, 4 * c_out, c_in), lambda i: (0, 0, 0)),
            pl.BlockSpec((4 * c_out, 1), lambda i: (0, 0)),
        ],
        out_specs=pl.BlockSpec((1, 4 * c_out, hw), lambda i: (i, 0, 0)),
        compiler_params=pltpu.CompilerParams(
            dimension_semantics=("parallel",)),
    )(x_flat, a_stack, b_tiled)

    # Interleave the 4 phase planes back into the caller's NCHW layout and crop
    # the (2h, 2w) super-grid to the true transposed-conv output size.
    full = phases.reshape(n, 2, 2, c_out, h, w)        # [n, py, px, o, a, b]
    full = jnp.transpose(full, (0, 3, 4, 1, 5, 2))     # [n, o, a, py, b, px]
    full = full.reshape(n, c_out, 2 * h, 2 * w)        # (n, o, 2a+py, 2b+px)
    return full[:, :, :out_h, :out_w]


# ----------------------------------------------------------------------------
# check_upsample: bilinear (align_corners=True) resize to `size` if needed.
# Pure gather/elementwise glue, kept in plain JAX.
# TODO(synk): assumes cultionet's check_upsample == F.interpolate(bilinear,
#             align_corners=True); implement as a Pallas kernel only if it
#             ever becomes a hot path.
# ----------------------------------------------------------------------------
def _bilinear_align_corners(x_nchw, out_h, out_w):
    n, c, h, w = x_nchw.shape
    ys = jnp.linspace(0.0, float(h - 1), out_h) if out_h > 1 else jnp.zeros((out_h,), jnp.float32)
    xs = jnp.linspace(0.0, float(w - 1), out_w) if out_w > 1 else jnp.zeros((out_w,), jnp.float32)
    y0 = jnp.floor(ys).astype(jnp.int32)
    x0 = jnp.floor(xs).astype(jnp.int32)
    y1 = jnp.minimum(y0 + 1, h - 1)
    x1 = jnp.minimum(x0 + 1, w - 1)
    wy = (ys - y0.astype(ys.dtype))[None, None, :, None]
    wx = (xs - x0.astype(xs.dtype))[None, None, None, :]
    g00 = x_nchw[:, :, y0][:, :, :, x0]
    g01 = x_nchw[:, :, y0][:, :, :, x1]
    g10 = x_nchw[:, :, y1][:, :, :, x0]
    g11 = x_nchw[:, :, y1][:, :, :, x1]
    top = g00 * (1.0 - wx) + g01 * wx
    bot = g10 * (1.0 - wx) + g11 * wx
    return (top * (1.0 - wy) + bot * wy).astype(x_nchw.dtype)


def check_upsample(x_nchw, size):
    out_h, out_w = int(size[0]), int(size[1])
    _, _, h, w = x_nchw.shape
    if (h, w) == (out_h, out_w):
        return x_nchw
    return _bilinear_align_corners(x_nchw, out_h, out_w)


# ----------------------------------------------------------------------------
# Module equivalent
# ----------------------------------------------------------------------------
class ConvTranspose2dPallas:
    def __init__(self, in_channels, out_channels, kernel_size=3, stride=2,
                 padding=1, *, key):
        self.stride = stride
        self.padding = padding
        kw_key, b_key = jax.random.split(key)
        # torch ConvTranspose2d weight shape: (in_channels, out_channels, kH, kW)
        fan = in_channels * kernel_size * kernel_size
        bound = 1.0 / (fan ** 0.5)
        self.weight = jax.random.uniform(
            kw_key, (in_channels, out_channels, kernel_size, kernel_size),
            minval=-bound, maxval=bound, dtype=jnp.float32)
        self.bias = jax.random.uniform(
            b_key, (out_channels,), minval=-bound, maxval=bound, dtype=jnp.float32)

    def __call__(self, x, size):
        y = conv_transpose2d_pallas(
            x, self.weight, self.bias, stride=self.stride, padding=self.padding)
        return check_upsample(y, size=size)


# ----------------------------------------------------------------------------
# Main
# ----------------------------------------------------------------------------
if __name__ == "__main__":
    key = jax.random.PRNGKey(0)
    x_key, p_key = jax.random.split(key)

    N, C_IN, H, W = 2, 4, 16, 16
    C_OUT = 8
    K, S, P = 3, 2, 1
    x = jax.random.normal(x_key, (N, C_IN, H, W), dtype=jnp.float32)
    size = (2 * H, 2 * W)  # target size (skip-connection resolution)

    module = ConvTranspose2dPallas(C_IN, C_OUT, kernel_size=K, stride=S,
                                   padding=P, key=p_key)

    out = module(x, size)
    out = jax.block_until_ready(out)

    # Reference: ConvTranspose2d(x, W; s, p) == conv over the stride-dilated
    # input, edge-padded by (k - 1 - p), with the spatially flipped and
    # (in, out)-swapped kernel.
    rhs = jnp.transpose(module.weight[:, :, ::-1, ::-1], (1, 0, 2, 3))  # OIHW
    ref_conv = jax.lax.conv_general_dilated(
        x, rhs, window_strides=(1, 1),
        padding=[(K - 1 - P, K - 1 - P), (K - 1 - P, K - 1 - P)],
        lhs_dilation=(S, S),
        dimension_numbers=("NCHW", "OIHW", "NCHW"),
    ) + module.bias[None, :, None, None]
    ref_out = check_upsample(ref_conv, size)

    out_h = (H - 1) * S - 2 * P + K
    out_w = (W - 1) * S - 2 * P + K
    assert ref_conv.shape == (N, C_OUT, out_h, out_w)
    assert out.shape == (N, C_OUT, size[0], size[1])
    assert jnp.allclose(out, ref_out, atol=1e-4, rtol=1e-4), (
        float(jnp.max(jnp.abs(out - ref_out))))

    print("KERNEL_OK")
</pallas_src>

<mosaic_0001>
module attributes {stable_mosaic.version = 11 : i64} {
  func.func @_polyphase_convt_kernel(%arg0: i32, %arg1: memref<1x4x384xf32, #tpu.memory_space<vmem>>, %arg2: memref<4x32x4xf32, #tpu.memory_space<vmem>>, %arg3: memref<32x1xf32, #tpu.memory_space<vmem>>, %arg4: memref<1x32x256xf32, #tpu.memory_space<vmem>>) attributes {dimension_semantics = [#tpu.dimension_semantics<parallel>], iteration_bounds = array<i64: 2>, scalar_prefetch = 0 : i64, scratch_operands = 0 : i64, tpu.core_type = #tpu.core_type<tc>, window_params = [{transform_indices = @transform_0, window_bounds = array<i64: 1, 4, 384>}, {pipeline_mode = #tpu.pipeline_mode<synchronous>, transform_indices = @transform_1, window_bounds = array<i64: 4, 32, 4>}, {pipeline_mode = #tpu.pipeline_mode<synchronous>, transform_indices = @transform_2, window_bounds = array<i64: 32, 1>}, {transform_indices = @transform_3, window_bounds = array<i64: 1, 32, 256>}]} {
    %c0 = arith.constant 0 : index
    %c0_0 = arith.constant 0 : index
    %c0_1 = arith.constant 0 : index
    %0 = vector.load %arg1[%c0, %c0_0, %c0_1] : memref<1x4x384xf32, #tpu.memory_space<vmem>>, vector<1x4x384xf32>
    %1 = vector.shape_cast %0 : vector<1x4x384xf32> to vector<4x384xf32>
    %2 = vector.extract_strided_slice %1 {offsets = [0, 0], sizes = [4, 256], strides = [1, 1]} : vector<4x384xf32> to vector<4x256xf32>
    %c0_2 = arith.constant 0 : index
    %c0_3 = arith.constant 0 : index
    %c0_4 = arith.constant 0 : index
    %3 = vector.load %arg2[%c0_2, %c0_3, %c0_4] : memref<4x32x4xf32, #tpu.memory_space<vmem>>, vector<1x32x4xf32>
    %4 = vector.shape_cast %3 : vector<1x32x4xf32> to vector<32x4xf32>
    %cst = arith.constant dense<0.000000e+00> : vector<32x256xf32>
    %5 = tpu.matmul %4, %2, %cst {dimension_numbers = #tpu.dot_dimension_numbers<[1], [0], [0], [1], [0, 0, 1, 1], [], []>} : vector<32x4xf32>, vector<4x256xf32>, vector<32x256xf32> -> vector<32x256xf32>
    %6 = vector.extract_strided_slice %1 {offsets = [0, 1], sizes = [4, 256], strides = [1, 1]} : vector<4x384xf32> to vector<4x256xf32>
    %c1 = arith.constant 1 : index
    %c0_5 = arith.constant 0 : index
    %c0_6 = arith.constant 0 : index
    %7 = vector.load %arg2[%c1, %c0_5, %c0_6] : memref<4x32x4xf32, #tpu.memory_space<vmem>>, vector<1x32x4xf32>
    %8 = vector.shape_cast %7 : vector<1x32x4xf32> to vector<32x4xf32>
    %cst_7 = arith.constant dense<0.000000e+00> : vector<32x256xf32>
    %9 = tpu.matmul %8, %6, %cst_7 {dimension_numbers = #tpu.dot_dimension_numbers<[1], [0], [0], [1], [0, 0, 1, 1], [], []>} : vector<32x4xf32>, vector<4x256xf32>, vector<32x256xf32> -> vector<32x256xf32>
    %10 = arith.addf %5, %9 : vector<32x256xf32>
    %11 = vector.extract_strided_slice %1 {offsets = [0, 16], sizes = [4, 256], strides = [1, 1]} : vector<4x384xf32> to vector<4x256xf32>
    %c2 = arith.constant 2 : index
    %c0_8 = arith.constant 0 : index
    %c0_9 = arith.constant 0 : index
    %12 = vector.load %arg2[%c2, %c0_8, %c0_9] : memref<4x32x4xf32, #tpu.memory_space<vmem>>, vector<1x32x4xf32>
    %13 = vector.shape_cast %12 : vector<1x32x4xf32> to vector<32x4xf32>
    %cst_10 = arith.constant dense<0.000000e+00> : vector<32x256xf32>
    %14 = tpu.matmul %13, %11, %cst_10 {dimension_numbers = #tpu.dot_dimension_numbers<[1], [0], [0], [1], [0, 0, 1, 1], [], []>} : vector<32x4xf32>, vector<4x256xf32>, vector<32x256xf32> -> vector<32x256xf32>
    %15 = arith.addf %10, %14 : vector<32x256xf32>
    %16 = vector.extract_strided_slice %1 {offsets = [0, 17], sizes = [4, 256], strides = [1, 1]} : vector<4x384xf32> to vector<4x256xf32>
    %c3 = arith.constant 3 : index
    %c0_11 = arith.constant 0 : index
    %c0_12 = arith.constant 0 : index
    %17 = vector.load %arg2[%c3, %c0_11, %c0_12] : memref<4x32x4xf32, #tpu.memory_space<vmem>>, vector<1x32x4xf32>
    %18 = vector.shape_cast %17 : vector<1x32x4xf32> to vector<32x4xf32>
    %cst_13 = arith.constant dense<0.000000e+00> : vector<32x256xf32>
    %19 = tpu.matmul %18, %16, %cst_13 {dimension_numbers = #tpu.dot_dimension_numbers<[1], [0], [0], [1], [0, 0, 1, 1], [], []>} : vector<32x4xf32>, vector<4x256xf32>, vector<32x256xf32> -> vector<32x256xf32>
    %20 = arith.addf %15, %19 : vector<32x256xf32>
    %c0_14 = arith.constant 0 : index
    %c0_15 = arith.constant 0 : index
    %21 = vector.load %arg3[%c0_14, %c0_15] : memref<32x1xf32, #tpu.memory_space<vmem>>, vector<32x1xf32>
    %22 = vector.broadcast %21 : vector<32x1xf32> to vector<32x256xf32>
    %23 = arith.addf %20, %22 : vector<32x256xf32>
    %c0_16 = arith.constant 0 : index
    %c0_17 = arith.constant 0 : index
    %c0_18 = arith.constant 0 : index
    %24 = vector.load %arg4[%c0_16, %c0_17, %c0_18] : memref<1x32x256xf32, #tpu.memory_space<vmem>>, vector<1x32x256xf32>
    %25 = vector.shape_cast %24 : vector<1x32x256xf32> to vector<32x256xf32>
    %26 = vector.shape_cast %23 : vector<32x256xf32> to vector<1x32x256xf32>
    tpu.vector_store %arg4[%c0_16, %c0_17, %c0_18], %26 {strides = array<i32>} : memref<1x32x256xf32, #tpu.memory_space<vmem>>, vector<1x32x256xf32>,
    return
  }
  func.func @transform_0(%arg0: i32) -> (i32, i32, i32) {
    %c0_i32 = arith.constant 0 : i32
    %c0_i32_0 = arith.constant 0 : i32
    %c0_i32_1 = arith.constant 0 : i32
    return %arg0, %c0_i32, %c0_i32_0 : i32, i32, i32
  }
  func.func @transform_1(%arg0: i32) -> (i32, i32, i32) {
    %c0_i32 = arith.constant 0 : i32
    %c0_i32_0 = arith.constant 0 : i32
    %c0_i32_1 = arith.constant 0 : i32
    %c0_i32_2 = arith.constant 0 : i32
    return %c0_i32, %c0_i32_0, %c0_i32_1 : i32, i32, i32
  }
  func.func @transform_2(%arg0: i32) -> (i32, i32) {
    %c0_i32 = arith.constant 0 : i32
    %c0_i32_0 = arith.constant 0 : i32
    %c0_i32_1 = arith.constant 0 : i32
    return %c0_i32, %c0_i32_0 : i32, i32
  }
  func.func @transform_3(%arg0: i32) -> (i32, i32, i32) {
    %c0_i32 = arith.constant 0 : i32
    %c0_i32_0 = arith.constant 0 : i32
    %c0_i32_1 = arith.constant 0 : i32
    return %arg0, %c0_i32, %c0_i32_0 : i32, i32, i32
  }
}

</mosaic_0001>

<llo_original>
// kernel: tpu_custom_call.1
$region0: #{tpu_custom_call.1}
  #allocation0 [shape = 'u32[]', space=smem, size = 0x4, offset = 0x4, fixed_abs, tag = 'smem constant byte address 0x4 - core index']
  #allocation1 [shape = 'u32[144,128]{1,0:T(1,128)}', space=vmem, size = 0x12000, scoped, tag = 'internal scratch']
  %s0 = inlined_call_operand.vmem [shape: f32[2,4,384], index: 0, kind: input, shape index: {}]
  %s1 = inlined_call_operand.vmem [shape: f32[4,32,4], index: 1, kind: input, shape index: {}]
  %s2 = inlined_call_operand.vmem [shape: f32[32,1], index: 2, kind: input, shape index: {}]
  %s3 = inlined_call_operand.hbm [shape: f32[2,32,256], index: 3, kind: output, shape index: {}]
  %s4 = sld [smem:[#allocation0]]
  $region45: #{tpu_custom_call.1} parent=0
    _
  %s6 = ssub.s32 1, %s4
  %s7 = scalar_select 0, %s6, %s4
  $region1: #{tpu_custom_call.1} parent=0
    #allocation2 [shape = 'u8[65536]{0}', space=vmem, size = 0x10000, scoped, tag = 'output window, operand 0']
    #allocation3 [shape = 's32[2]{0}', space=sflag, size = 0x8, scoped, tag = 'scoped memory for tpu_custom_call.1']
    %8 = vsyncpa [#allocation3], 0
    %s9 = scalar_lea.sflag [#allocation3], 1
    %10 = vsyncpa %s9, 0
    loop: start=0, step=1, limit=4
    $region2: #{tpu_custom_call.1} parent=1 // loop_pre_header
      _
    $region3: #{tpu_custom_call.1} parent=1 // loop_header
      %s12 = sphi 0, %s16
      %p13 = scmp.ge.s32.totalorder %s12, 4
      %s22 = sphi 0, %s24
      %s25 = sphi 0, %s22
      %s26 = sphi 0, %s25
      %s42 = sphi 0, %s26
      %s46 = sphi 0, %s46
      %s48 = sphi 0, %s46
      %s49 = sphi 0, %s48
      %s63 = sphi 0, %s49
      %s67 = sphi 0, %s67
      %s69 = sphi 0, %s67
      %s70 = sphi 0, %s69
      %s84 = sphi 0, %s70
      %s90 = sphi 0, %s92
      %s93 = sphi 0, %s90
      %s94 = sphi 0, %s93
      %s110 = sphi 0, %s94
    $region4: #{tpu_custom_call.1} parent=1 // loop_header_branch
      %15 = sbr.rel (%p13) target = $region8
    $region5: #{tpu_custom_call.1} parent=1 // loop_body
      %s17 = ssub.s32 %s12, 1
      %s18 = ssub.s32 %s12, 2
      %s19 = sadd.s32 %s12, 1
      %s20 = ssub.s32 %s12, %s19
      %p21 = scmp.eq.s32.totalorder %s20, 0
      %s23 = sadd.s32 %s22, 1
      %s24 = scalar_select %p21, %s22, %s23
      %p27 = pneg %p21
      %p28 = scmp.eq.s32.totalorder %s12, 1
      %p29 = por %p27, %p28
      %p30 = scmp.ne.s32.totalorder %s22, %s25
      %p31 = scmp.eq.s32.totalorder %s12, 0
      %p32 = por %p30, %p31
      %p33 = scmp.ne.s32.totalorder %s22, %s25
      %p34 = scmp.eq.s32.totalorder %s17, 1
      %p35 = por %p33, %p34
      %p36 = scmp.ne.s32.totalorder %s25, %s26
      %p37 = scmp.eq.s32.totalorder %s17, 0
      %p38 = por %p36, %p37
      %p39 = scmp.ne.s32.totalorder %s25, %s26
      %p40 = scmp.eq.s32.totalorder %s18, 1
      %p41 = por %p39, %p40
      %p43 = scmp.ne.s32.totalorder %s26, %s42
      %p44 = scmp.eq.s32.totalorder %s18, 0
      %p45 = por %p43, %p44
      %s47 = sadd.s32 %s46, 1
      %p50 = scmp.eq.s32.totalorder %s12, 1
      %p51 = scmp.ne.s32.totalorder %s46, %s48
      %p52 = scmp.eq.s32.totalorder %s12, 0
      %p53 = por %p51, %p52
      %p54 = scmp.ne.s32.totalorder %s46, %s48
      %p55 = scmp.eq.s32.totalorder %s17, 1
      %p56 = por %p54, %p55
      %p57 = scmp.ne.s32.totalorder %s48, %s49
      %p58 = scmp.eq.s32.totalorder %s17, 0
      %p59 = por %p57, %p58
      %p60 = scmp.ne.s32.totalorder %s48, %s49
      %p61 = scmp.eq.s32.totalorder %s18, 1
      %p62 = por %p60, %p61
      %p64 = scmp.ne.s32.totalorder %s49, %s63
      %p65 = scmp.eq.s32.totalorder %s18, 0
      %p66 = por %p64, %p65
      %s68 = sadd.s32 %s67, 1
      %p71 = scmp.eq.s32.totalorder %s12, 1
      %p72 = scmp.ne.s32.totalorder %s67, %s69
      %p73 = scmp.eq.s32.totalorder %s12, 0
      %p74 = por %p72, %p73
      %p75 = scmp.ne.s32.totalorder %s67, %s69
      %p76 = scmp.eq.s32.totalorder %s17, 1
      %p77 = por %p75, %p76
      %p78 = scmp.ne.s32.totalorder %s69, %s70
      %p79 = scmp.eq.s32.totalorder %s17, 0
      %p80 = por %p78, %p79
      %p81 = scmp.ne.s32.totalorder %s69, %s70
      %p82 = scmp.eq.s32.totalorder %s18, 1
      %p83 = por %p81, %p82
      %p85 = scmp.ne.s32.totalorder %s70, %s84
      %p86 = scmp.eq.s32.totalorder %s18, 0
      %p87 = por %p85, %p86
      %s88 = ssub.s32 %s12, %s19
      %p89 = scmp.eq.s32.totalorder %s88, 0
      %s91 = sadd.s32 %s90, 1
      %s92 = scalar_select %p89, %s90, %s91
      %p95 = pneg %p89
      %p96 = scmp.eq.s32.totalorder %s12, 1
      %p97 = por %p95, %p96
      %p98 = scmp.ne.s32.totalorder %s90, %s93
      %p99 = scmp.eq.s32.totalorder %s12, 0
      %p100 = por %p98, %p99
      %p101 = scmp.ne.s32.totalorder %s90, %s93
      %p102 = scmp.eq.s32.totalorder %s17, 1
      %p103 = por %p101, %p102
      %p104 = scmp.ne.s32.totalorder %s93, %s94
      %p105 = scmp.eq.s32.totalorder %s17, 0
      %p106 = por %p104, %p105
      %p107 = scmp.ne.s32.totalorder %s93, %s94
      %p108 = scmp.eq.s32.totalorder %s18, 1
      %p109 = por %p107, %p108
      %p111 = scmp.ne.s32.totalorder %s94, %s110
      %p112 = scmp.eq.s32.totalorder %s18, 0
      %p113 = por %p111, %p112
      %p114 = scmp.le.s32.totalorder 1, %s12
      %p115 = scmp.lt.s32.totalorder %s12, 3
      %p116 = pnand %p114, %p115
      %p117 = pneg %p116
      // Predicated region
      $region9: #{tpu_custom_call.1} parent=5 // pred_check
        _
      $region10: #{tpu_custom_call.1} parent=5 // pred_check_branch
        %119 = sbr.rel (%p116) target = $region12
      $region11: #{tpu_custom_call.1} parent=5 // pred_region
        %s120 = ssub.s32 %s12, 1
        // Predicated region
        $region13: #{tpu_custom_call.1} parent=11 // pred_check
          %p121 = pneg %p59
        $region14: #{tpu_custom_call.1} parent=11 // pred_check_branch
          %123 = sbr.rel (%p121) target = $region16
        $region15: #{tpu_custom_call.1} parent=11 // pred_region
          _
        $region16: #{tpu_custom_call.1} parent=11 // pred_fallthru
          _
        // Predicated region
        $region17: #{tpu_custom_call.1} parent=11 // pred_check
          %p124 = pneg %p80
        $region18: #{tpu_custom_call.1} parent=11 // pred_check_branch
          %126 = sbr.rel (%p124) target = $region20
        $region19: #{tpu_custom_call.1} parent=11 // pred_region
          _
        $region20: #{tpu_custom_call.1} parent=11 // pred_fallthru
          _
      $region12: #{tpu_custom_call.1} parent=5 // pred_fallthru
        _
      %p127 = scmp.lt.s32.totalorder %s12, 2
      // Predicated region
      $region21: #{tpu_custom_call.1} parent=5 // pred_check
        %p128 = pneg %p127
      $region22: #{tpu_custom_call.1} parent=5 // pred_check_branch
        %130 = sbr.rel (%p128) target = $region24
      $region23: #{tpu_custom_call.1} parent=5 // pred_region
        // Predicated region
        $region25: #{tpu_custom_call.1} parent=23 // pred_check
          %p131 = pneg %p32
        $region26: #{tpu_custom_call.1} parent=23 // pred_check_branch
          %133 = sbr.rel (%p131) target = $region28
        $region27: #{tpu_custom_call.1} parent=23 // pred_region
          %p134 = scmp.lt.s32.totalorder %s12, 1
          %s135 = scalar_select %p134, %s12, 1
          %s136 = smul.addr %s135, 3
          %s137 = smul.addr %s136, 4
          %s138 = scalar_lea.vmem %s0, %s137
        $region28: #{tpu_custom_call.1} parent=23 // pred_fallthru
          _
      $region24: #{tpu_custom_call.1} parent=5 // pred_fallthru
        _
      %p139 = scmp.le.s32.totalorder 1, %s12
      %p140 = scmp.lt.s32.totalorder %s12, 3
      %p141 = pnand %p139, %p140
      %p142 = pneg %p141
      // Predicated region
      $region29: #{tpu_custom_call.1} parent=5 // pred_check
        _
      $region30: #{tpu_custom_call.1} parent=5 // pred_check_branch
        %144 = sbr.rel (%p141) target = $region32
      $region31: #{tpu_custom_call.1} parent=5 // pred_region
        %s145 = ssub.s32 %s12, 1
        %p146 = scmp.lt.s32.totalorder %s17, 1
        %s147 = scalar_select %p146, %s17, 1
        %s148 = smul.addr %s147, 3
        %s149 = smul.addr %s148, 4
        %s150 = scalar_lea.vmem %s0, %s149
        %p151 = pneg %p38
        %p152 = pneg %p35
        %p153 = pneg %p59
        %p154 = pneg %p56
        %p155 = pneg %p80
        %p156 = pneg %p77
        %p157 = pneg %p106
        %p158 = pneg %p103
        %s159 = sand.u32 %s93, 1
        %s160 = scalar_lea.sflag [#allocation3], %s159
        %s161 = sand.u32 %s93, 1
        %s162 = smul.addr %s161, 64
        %s163 = scalar_lea.vmem [#allocation2], %s162
        %p164 = scmp.lt.s32.totalorder %s17, 1
        %s165 = scalar_select %p164, %s17, 1
        %s166 = smul.addr %s165, 3
        %s167 = smul.addr %s166, 4
        %s168 = scalar_lea.vmem %s0, %s167
        %v169 = vld [vmem:[%s168] sm:$0xff]
        %v170 = vld [vmem:[%s168 + $0x8] sm:$0xf]
        %v171 = vld [vmem:[%s1] sm:$0xff]
        %v172 = vld [vmem:[%s1 + $0x8] sm:$0xff]
        %v173 = vld [vmem:[%s1 + $0x10] sm:$0xff]
        %v174 = vld [vmem:[%s1 + $0x18] sm:$0xff]
        %s175 = scalar_lea.vmem %s1, 32
        %v176 = vld [vmem:[%s175] sm:$0xff]
        %v177 = vld [vmem:[%s175 + $0x8] sm:$0xff]
        %v178 = vld [vmem:[%s175 + $0x10] sm:$0xff]
        %v179 = vld [vmem:[%s175 + $0x18] sm:$0xff]
        %v182 = vcombine.high %v169, %v169
        %183 = vrot.lane.b32.xlu0 %v169, 127
        %v184 = vpop.permute.xlu0 %183
        %185 = vrot.lane.b32.xlu0 %v182, 127
        %v186 = vpop.permute.xlu0 %185
        %187 = vrot.lane.b32.xlu0 %v170, 127
        %v188 = vpop.permute.xlu0 %187
        %vm189 = vcmask 1039360
        %v190 = vsel %vm189, %v184, %v186
        %v191 = vsel %vm189, %v186, %v188
        %vm192 = vcmask 31744
        %v194 = vsel %vm192, %v176, 0
        %v197 = vsel %vm192, %v177, 0
        %v200 = vsel %vm192, %v178, 0
        %v203 = vsel %vm192, %v179, 0
        %vm205 = vcmask 1043456
        %v206 = vsel %vm205, %v190, 0
        %v208 = vsel %vm205, %v191, 0
        %210 = vmatprep.subr.mxu0 0.0
        %211 = vmatpush1.msra.mxu0 0.0
        %212 = vmatprep.subr.mxu0 0.0
        %213 = vmatpush1.msra.mxu0 0.0
        %214 = vmatprep.subr.mxu0 0.0
        %215 = vmatpush1.msra.mxu0 0.0
        %216 = vmatprep.subr.mxu0 0.0
        %217 = vmatpush1.msra.mxu0 0.0
        %218 = vmatprep.subr.mxu0 0.0
        %219 = vmatpush1.msra.mxu0 0.0
        %220 = vmatprep.subr.mxu0 0.0
        %221 = vmatpush1.msra.mxu0 0.0
        %222 = vmatprep.subr.mxu0 0.0
        %223 = vmatpush1.msra.mxu0 0.0
        %224 = vmatprep.subr.mxu0 0.0
        %225 = vmatpush1.msra.mxu0 0.0
        %226 = vmatprep.subr.mxu0 0.0
        %227 = vmatpush1.msra.mxu0 0.0
        %228 = vmatprep.subr.mxu0 0.0
        %229 = vmatpush1.msra.mxu0 0.0
        %230 = vmatprep.subr.mxu0 0.0
        %231 = vmatpush1.msra.mxu0 0.0
        %232 = vmatprep.subr.mxu0 0.0
        %233 = vmatpush1.msra.mxu0 0.0
        %234 = vmatprep.subr.mxu0 0.0
        %235 = vmatpush1.msra.mxu0 0.0
        %236 = vmatprep.subr.mxu0 0.0
        %237 = vmatpush1.msra.mxu0 0.0
        %238 = vmatprep.subr.mxu0 0.0
        %239 = vmatpush1.msra.mxu0 0.0
        %240 = vmatprep.subr.mxu0 %v208
        %241 = vmatpush1.msra.mxu0 %v206
        %242 = vmatprep.subr.mxu0 0.0
        %243 = vmatpush2.msra.mxu0 0.0
        %244 = vmatprep.subr.mxu0 0.0
        %245 = vmatpush2.msra.mxu0 0.0
        %246 = vmatprep.subr.mxu0 0.0
        %247 = vmatpush2.msra.mxu0 0.0
        %248 = vmatprep.subr.mxu0 0.0
        %249 = vmatpush2.msra.mxu0 0.0
        %250 = vmatprep.subr.mxu0 0.0
        %251 = vmatpush2.msra.mxu0 0.0
        %252 = vmatprep.subr.mxu0 0.0
        %253 = vmatpush2.msra.mxu0 0.0
        %254 = vmatprep.subr.mxu0 0.0
        %255 = vmatpush2.msra.mxu0 0.0
        %256 = vmatprep.subr.mxu0 0.0
        %257 = vmatpush2.msra.mxu0 0.0
        %258 = vmatprep.subr.mxu0 0.0
        %259 = vmatpush2.msra.mxu0 0.0
        %260 = vmatprep.subr.mxu0 0.0
        %261 = vmatpush2.msra.mxu0 0.0
        %262 = vmatprep.subr.mxu0 0.0
        %263 = vmatpush2.msra.mxu0 0.0
        %264 = vmatprep.subr.mxu0 0.0
        %265 = vmatpush2.msra.mxu0 0.0
        %266 = vmatprep.subr.mxu0 0.0
        %267 = vmatpush2.msra.mxu0 0.0
        %268 = vmatprep.subr.mxu0 0.0
        %269 = vmatpush2.msra.mxu0 0.0
        %270 = vmatprep.subr.mxu0 0.0
        %271 = vmatpush2.msra.mxu0 0.0
        %272 = vmatprep.subr.mxu0 0.0
        %273 = vmatpush2.msra.mxu0 0.0
        %274 = vmatprep.mubr.f32.mxu0 0.0
        %275 = vmatmul.mubr.f32.gmra.mxu0 %v194
        %v276 = vpop.f32.mrf.mxu0
        %v277 = vadd.f32 0.0, %v276
        %v278 = vpop.f32.mrf.mxu0
        %v279 = vadd.f32 0.0, %v278
        %280 = vmatprep.mubr.f32.mxu0 0.0
        %281 = vmatmul.mubr.f32.gmra.mxu0 %v197
        %v282 = vpop.f32.mrf.mxu0
        %v283 = vadd.f32 0.0, %v282
        %v284 = vpop.f32.mrf.mxu0
        %v285 = vadd.f32 0.0, %v284
        %286 = vmatprep.mubr.f32.mxu0 0.0
        %287 = vmatmul.mubr.f32.gmra.mxu0 %v200
        %v288 = vpop.f32.mrf.mxu0
        %v289 = vadd.f32 0.0, %v288
        %v290 = vpop.f32.mrf.mxu0
        %v291 = vadd.f32 0.0, %v290
        %292 = vmatprep.mubr.f32.mxu0 0.0
        %293 = vmatmul.mubr.f32.gmra.mxu0 %v203
        %v294 = vpop.f32.mrf.mxu0
        %v295 = vadd.f32 0.0, %v294
        %v296 = vpop.f32.mrf.mxu0
        %v297 = vadd.f32 0.0, %v296
        %298 = vdwg.mxu0
        %v300 = vsel %vm192, %v171, 0
        %v303 = vsel %vm192, %v172, 0
        %v306 = vsel %vm192, %v173, 0
        %v309 = vsel %vm192, %v174, 0
        %v311 = vsel %vm205, %v169, 0
        %v313 = vsel %vm205, %v182, 0
        %315 = vmatprep.subr.mxu0 0.0
        %316 = vmatpush1.msra.mxu0 0.0
        %317 = vmatprep.subr.mxu0 0.0
        %318 = vmatpush1.msra.mxu0 0.0
        %319 = vmatprep.subr.mxu0 0.0
        %320 = vmatpush1.msra.mxu0 0.0
        %321 = vmatprep.subr.mxu0 0.0
        %322 = vmatpush1.msra.mxu0 0.0
        %323 = vmatprep.subr.mxu0 0.0
        %324 = vmatpush1.msra.mxu0 0.0
        %325 = vmatprep.subr.mxu0 0.0
        %326 = vmatpush1.msra.mxu0 0.0
        %327 = vmatprep.subr.mxu0 0.0
        %328 = vmatpush1.msra.mxu0 0.0
        %329 = vmatprep.subr.mxu0 0.0
        %330 = vmatpush1.msra.mxu0 0.0
        %331 = vmatprep.subr.mxu0 0.0
        %332 = vmatpush1.msra.mxu0 0.0
        %333 = vmatprep.subr.mxu0 0.0
        %334 = vmatpush1.msra.mxu0 0.0
        %335 = vmatprep.subr.mxu0 0.0
        %336 = vmatpush1.msra.mxu0 0.0
        %337 = vmatprep.subr.mxu0 0.0
        %338 = vmatpush1.msra.mxu0 0.0
        %339 = vmatprep.subr.mxu0 0.0
        %340 = vmatpush1.msra.mxu0 0.0
        %341 = vmatprep.subr.mxu0 0.0
        %342 = vmatpush1.msra.mxu0 0.0
        %343 = vmatprep.subr.mxu0 0.0
        %344 = vmatpush1.msra.mxu0 0.0
        %345 = vmatprep.subr.mxu0 %v313
        %346 = vmatpush1.msra.mxu0 %v311
        %347 = vmatprep.subr.mxu0 0.0
        %348 = vmatpush2.msra.mxu0 0.0
        %349 = vmatprep.subr.mxu0 0.0
        %350 = vmatpush2.msra.mxu0 0.0
        %351 = vmatprep.subr.mxu0 0.0
        %352 = vmatpush2.msra.mxu0 0.0
        %353 = vmatprep.subr.mxu0 0.0
        %354 = vmatpush2.msra.mxu0 0.0
        %355 = vmatprep.subr.mxu0 0.0
        %356 = vmatpush2.msra.mxu0 0.0
        %357 = vmatprep.subr.mxu0 0.0
        %358 = vmatpush2.msra.mxu0 0.0
        %359 = vmatprep.subr.mxu0 0.0
        %360 = vmatpush2.msra.mxu0 0.0
        %361 = vmatprep.subr.mxu0 0.0
        %362 = vmatpush2.msra.mxu0 0.0
        %363 = vmatprep.subr.mxu0 0.0
        %364 = vmatpush2.msra.mxu0 0.0
        %365 = vmatprep.subr.mxu0 0.0
        %366 = vmatpush2.msra.mxu0 0.0
        %367 = vmatprep.subr.mxu0 0.0
        %368 = vmatpush2.msra.mxu0 0.0
        %369 = vmatprep.subr.mxu0 0.0
        %370 = vmatpush2.msra.mxu0 0.0
        %371 = vmatprep.subr.mxu0 0.0
        %372 = vmatpush2.msra.mxu0 0.0
        %373 = vmatprep.subr.mxu0 0.0
        %374 = vmatpush2.msra.mxu0 0.0
        %375 = vmatprep.subr.mxu0 0.0
        %376 = vmatpush2.msra.mxu0 0.0
        %377 = vmatprep.subr.mxu0 0.0
        %378 = vmatpush2.msra.mxu0 0.0
        %379 = vmatprep.mubr.f32.mxu0 0.0
        %380 = vmatmul.mubr.f32.gmra.mxu0 %v300
        %v381 = vpop.f32.mrf.mxu0
        %v382 = vadd.f32 %v277, %v381
        %v383 = vpop.f32.mrf.mxu0
        %v384 = vadd.f32 %v279, %v383
        %385 = vmatprep.mubr.f32.mxu0 0.0
        %386 = vmatmul.mubr.f32.gmra.mxu0 %v303
        %v387 = vpop.f32.mrf.mxu0
        %v388 = vadd.f32 %v283, %v387
        %v389 = vpop.f32.mrf.mxu0
        %v390 = vadd.f32 %v285, %v389
        %391 = vmatprep.mubr.f32.mxu0 0.0
        %392 = vmatmul.mubr.f32.gmra.mxu0 %v306
        %v393 = vpop.f32.mrf.mxu0
        %v394 = vadd.f32 %v289, %v393
        %v395 = vpop.f32.mrf.mxu0
        %v396 = vadd.f32 %v291, %v395
        %397 = vmatprep.mubr.f32.mxu0 0.0
        %398 = vmatmul.mubr.f32.gmra.mxu0 %v309
        %v399 = vpop.f32.mrf.mxu0
        %v400 = vadd.f32 %v295, %v399
        %v401 = vpop.f32.mrf.mxu0
        %v402 = vadd.f32 %v297, %v401
        %403 = vdwg.mxu0
        %s404 = scalar_lea.vmem %s1, 64
        %v405 = vld [vmem:[%s404] sm:$0xff]
        %v406 = vld [vmem:[%s404 + $0x8] sm:$0xff]
        %v407 = vld [vmem:[%s404 + $0x10] sm:$0xff]
        %v408 = vld [vmem:[%s404 + $0x18] sm:$0xff]
        %409 = vrot.lane.b32.xlu0 %v169, 112
        %v410 = vpop.permute.xlu0 %409
        %411 = vrot.lane.b32.xlu0 %v182, 112
        %v412 = vpop.permute.xlu0 %411
        %413 = vrot.lane.b32.xlu0 %v170, 112
        %v414 = vpop.permute.xlu0 %413
        %vm415 = vcmask 916480
        %v416 = vsel %vm415, %v410, %v412
        %v417 = vsel %vm415, %v412, %v414
        %v419 = vsel %vm192, %v405, 0
        %v422 = vsel %vm192, %v406, 0
        %v425 = vsel %vm192, %v407, 0
        %v428 = vsel %vm192, %v408, 0
        %v430 = vsel %vm205, %v416, 0
        %v432 = vsel %vm205, %v417, 0
        %434 = vmatprep.subr.mxu0 0.0
        %435 = vmatpush1.msra.mxu0 0.0
        %436 = vmatprep.subr.mxu0 0.0
        %437 = vmatpush1.msra.mxu0 0.0
        %438 = vmatprep.subr.mxu0 0.0
        %439 = vmatpush1.msra.mxu0 0.0
        %440 = vmatprep.subr.mxu0 0.0
        %441 = vmatpush1.msra.mxu0 0.0
        %442 = vmatprep.subr.mxu0 0.0
        %443 = vmatpush1.msra.mxu0 0.0
        %444 = vmatprep.subr.mxu0 0.0
        %445 = vmatpush1.msra.mxu0 0.0
        %446 = vmatprep.subr.mxu0 0.0
        %447 = vmatpush1.msra.mxu0 0.0
        %448 = vmatprep.subr.mxu0 0.0
        %449 = vmatpush1.msra.mxu0 0.0
        %450 = vmatprep.subr.mxu0 0.0
        %451 = vmatpush1.msra.mxu0 0.0
        %452 = vmatprep.subr.mxu0 0.0
        %453 = vmatpush1.msra.mxu0 0.0
        %454 = vmatprep.subr.mxu0 0.0
        %455 = vmatpush1.msra.mxu0 0.0
        %456 = vmatprep.subr.mxu0 0.0
        %457 = vmatpush1.msra.mxu0 0.0
        %458 = vmatprep.subr.mxu0 0.0
        %459 = vmatpush1.msra.mxu0 0.0
        %460 = vmatprep.subr.mxu0 0.0
        %461 = vmatpush1.msra.mxu0 0.0
        %462 = vmatprep.subr.mxu0 0.0
        %463 = vmatpush1.msra.mxu0 0.0
        %464 = vmatprep.subr.mxu0 %v432
        %465 = vmatpush1.msra.mxu0 %v430
        %466 = vmatprep.subr.mxu0 0.0
        %467 = vmatpush2.msra.mxu0 0.0
        %468 = vmatprep.subr.mxu0 0.0
        %469 = vmatpush2.msra.mxu0 0.0
        %470 = vmatprep.subr.mxu0 0.0
        %471 = vmatpush2.msra.mxu0 0.0
        %472 = vmatprep.subr.mxu0 0.0
        %473 = vmatpush2.msra.mxu0 0.0
        %474 = vmatprep.subr.mxu0 0.0
        %475 = vmatpush2.msra.mxu0 0.0
        %476 = vmatprep.subr.mxu0 0.0
        %477 = vmatpush2.msra.mxu0 0.0
        %478 = vmatprep.subr.mxu0 0.0
        %479 = vmatpush2.msra.mxu0 0.0
        %480 = vmatprep.subr.mxu0 0.0
        %481 = vmatpush2.msra.mxu0 0.0
        %482 = vmatprep.subr.mxu0 0.0
        %483 = vmatpush2.msra.mxu0 0.0
        %484 = vmatprep.subr.mxu0 0.0
        %485 = vmatpush2.msra.mxu0 0.0
        %486 = vmatprep.subr.mxu0 0.0
        %487 = vmatpush2.msra.mxu0 0.0
        %488 = vmatprep.subr.mxu0 0.0
        %489 = vmatpush2.msra.mxu0 0.0
        %490 = vmatprep.subr.mxu0 0.0
        %491 = vmatpush2.msra.mxu0 0.0
        %492 = vmatprep.subr.mxu0 0.0
        %493 = vmatpush2.msra.mxu0 0.0
        %494 = vmatprep.subr.mxu0 0.0
        %495 = vmatpush2.msra.mxu0 0.0
        %496 = vmatprep.subr.mxu0 0.0
        %497 = vmatpush2.msra.mxu0 0.0
        %498 = vmatprep.mubr.f32.mxu0 0.0
        %499 = vmatmul.mubr.f32.gmra.mxu0 %v419
        %v500 = vpop.f32.mrf.mxu0
        %v501 = vadd.f32 0.0, %v500
        %v502 = vpop.f32.mrf.mxu0
        %v503 = vadd.f32 0.0, %v502
        %504 = vmatprep.mubr.f32.mxu0 0.0
        %505 = vmatmul.mubr.f32.gmra.mxu0 %v422
        %v506 = vpop.f32.mrf.mxu0
        %v507 = vadd.f32 0.0, %v506
        %v508 = vpop.f32.mrf.mxu0
        %v509 = vadd.f32 0.0, %v508
        %510 = vmatprep.mubr.f32.mxu0 0.0
        %511 = vmatmul.mubr.f32.gmra.mxu0 %v425
        %v512 = vpop.f32.mrf.mxu0
        %v513 = vadd.f32 0.0, %v512
        %v514 = vpop.f32.mrf.mxu0
        %v515 = vadd.f32 0.0, %v514
        %516 = vmatprep.mubr.f32.mxu0 0.0
        %517 = vmatmul.mubr.f32.gmra.mxu0 %v428
        %v518 = vpop.f32.mrf.mxu0
        %v519 = vadd.f32 0.0, %v518
        %v520 = vpop.f32.mrf.mxu0
        %v521 = vadd.f32 0.0, %v520
        %522 = vdwg.mxu0
        %v523 = vadd.f32 %v382, %v501
        %v524 = vadd.f32 %v384, %v503
        %v525 = vadd.f32 %v388, %v507
        %v526 = vadd.f32 %v390, %v509
        %v527 = vadd.f32 %v394, %v513
        %v528 = vadd.f32 %v396, %v515
        %v529 = vadd.f32 %v400, %v519
        %v530 = vadd.f32 %v402, %v521
        %s531 = scalar_lea.vmem %s1, 96
        %v532 = vld [vmem:[%s531] sm:$0xff]
        %v533 = vld [vmem:[%s531 + $0x8] sm:$0xff]
        %v534 = vld [vmem:[%s531 + $0x10] sm:$0xff]
        %v535 = vld [vmem:[%s531 + $0x18] sm:$0xff]
        %536 = vrot.lane.b32.xlu0 %v169, 111
        %v537 = vpop.permute.xlu0 %536
        %538 = vrot.lane.b32.xlu0 %v182, 111
        %v539 = vpop.permute.xlu0 %538
        %540 = vrot.lane.b32.xlu0 %v170, 111
        %v541 = vpop.permute.xlu0 %540
        %vm542 = vcmask 908288
        %v543 = vsel %vm542, %v537, %v539
        %v544 = vsel %vm542, %v539, %v541
        %v546 = vsel %vm192, %v532, 0
        %v549 = vsel %vm192, %v533, 0
        %v552 = vsel %vm192, %v534, 0
        %v555 = vsel %vm192, %v535, 0
        %v557 = vsel %vm205, %v543, 0
        %v559 = vsel %vm205, %v544, 0
        %561 = vmatprep.subr.mxu0 0.0
        %562 = vmatpush1.msra.mxu0 0.0
        %563 = vmatprep.subr.mxu0 0.0
        %564 = vmatpush1.msra.mxu0 0.0
        %565 = vmatprep.subr.mxu0 0.0
        %566 = vmatpush1.msra.mxu0 0.0
        %567 = vmatprep.subr.mxu0 0.0
        %568 = vmatpush1.msra.mxu0 0.0
        %569 = vmatprep.subr.mxu0 0.0
        %570 = vmatpush1.msra.mxu0 0.0
        %571 = vmatprep.subr.mxu0 0.0
        %572 = vmatpush1.msra.mxu0 0.0
        %573 = vmatprep.subr.mxu0 0.0
        %574 = vmatpush1.msra.mxu0 0.0
        %575 = vmatprep.subr.mxu0 0.0
        %576 = vmatpush1.msra.mxu0 0.0
        %577 = vmatprep.subr.mxu0 0.0
        %578 = vmatpush1.msra.mxu0 0.0
        %579 = vmatprep.subr.mxu0 0.0
        %580 = vmatpush1.msra.mxu0 0.0
        %581 = vmatprep.subr.mxu0 0.0
        %582 = vmatpush1.msra.mxu0 0.0
        %583 = vmatprep.subr.mxu0 0.0
        %584 = vmatpush1.msra.mxu0 0.0
        %585 = vmatprep.subr.mxu0 0.0
        %586 = vmatpush1.msra.mxu0 0.0
        %587 = vmatprep.subr.mxu0 0.0
        %588 = vmatpush1.msra.mxu0 0.0
        %589 = vmatprep.subr.mxu0 0.0
        %590 = vmatpush1.msra.mxu0 0.0
        %591 = vmatprep.subr.mxu0 %v559
        %592 = vmatpush1.msra.mxu0 %v557
        %593 = vmatprep.subr.mxu0 0.0
        %594 = vmatpush2.msra.mxu0 0.0
        %595 = vmatprep.subr.mxu0 0.0
        %596 = vmatpush2.msra.mxu0 0.0
        %597 = vmatprep.subr.mxu0 0.0
        %598 = vmatpush2.msra.mxu0 0.0
        %599 = vmatprep.subr.mxu0 0.0
        %600 = vmatpush2.msra.mxu0 0.0
        %601 = vmatprep.subr.mxu0 0.0
        %602 = vmatpush2.msra.mxu0 0.0
        %603 = vmatprep.subr.mxu0 0.0
        %604 = vmatpush2.msra.mxu0 0.0
        %605 = vmatprep.subr.mxu0 0.0
        %606 = vmatpush2.msra.mxu0 0.0
        %607 = vmatprep.subr.mxu0 0.0
        %608 = vmatpush2.msra.mxu0 0.0
        %609 = vmatprep.subr.mxu0 0.0
        %610 = vmatpush2.msra.mxu0 0.0
        %611 = vmatprep.subr.mxu0 0.0
        %612 = vmatpush2.msra.mxu0 0.0
        %613 = vmatprep.subr.mxu0 0.0
        %614 = vmatpush2.msra.mxu0 0.0
        %615 = vmatprep.subr.mxu0 0.0
        %616 = vmatpush2.msra.mxu0 0.0
        %617 = vmatprep.subr.mxu0 0.0
        %618 = vmatpush2.msra.mxu0 0.0
        %619 = vmatprep.subr.mxu0 0.0
        %620 = vmatpush2.msra.mxu0 0.0
        %621 = vmatprep.subr.mxu0 0.0
        %622 = vmatpush2.msra.mxu0 0.0
        %623 = vmatprep.subr.mxu0 0.0
        %624 = vmatpush2.msra.mxu0 0.0
        %625 = vmatprep.mubr.f32.mxu0 0.0
        %626 = vmatmul.mubr.f32.gmra.mxu0 %v546
        %v627 = vpop.f32.mrf.mxu0
        %v628 = vadd.f32 0.0, %v627
        %v629 = vpop.f32.mrf.mxu0
        %v630 = vadd.f32 0.0, %v629
        %631 = vmatprep.mubr.f32.mxu0 0.0
        %632 = vmatmul.mubr.f32.gmra.mxu0 %v549
        %v633 = vpop.f32.mrf.mxu0
        %v634 = vadd.f32 0.0, %v633
        %v635 = vpop.f32.mrf.mxu0
        %v636 = vadd.f32 0.0, %v635
        %637 = vmatprep.mubr.f32.mxu0 0.0
        %638 = vmatmul.mubr.f32.gmra.mxu0 %v552
        %v639 = vpop.f32.mrf.mxu0
        %v640 = vadd.f32 0.0, %v639
        %v641 = vpop.f32.mrf.mxu0
        %v642 = vadd.f32 0.0, %v641
        %643 = vmatprep.mubr.f32.mxu0 0.0
        %644 = vmatmul.mubr.f32.gmra.mxu0 %v555
        %v645 = vpop.f32.mrf.mxu0
        %v646 = vadd.f32 0.0, %v645
        %v647 = vpop.f32.mrf.mxu0
        %v648 = vadd.f32 0.0, %v647
        %649 = vdwg.mxu0
        %v650 = vadd.f32 %v523, %v628
        %v651 = vadd.f32 %v524, %v630
        %v652 = vadd.f32 %v525, %v634
        %v653 = vadd.f32 %v526, %v636
        %v654 = vadd.f32 %v527, %v640
        %v655 = vadd.f32 %v528, %v642
        %v656 = vadd.f32 %v529, %v646
        %v657 = vadd.f32 %v530, %v648
        %v658 = vld [vmem:[%s2] sm:$0xff]
        %v659 = vld [vmem:[%s2 + $0x8] sm:$0xff]
        %v660 = vld [vmem:[%s2 + $0x10] sm:$0xff]
        %v661 = vld [vmem:[%s2 + $0x18] sm:$0xff]
        %663 = vset.pattern.permute.xlu0 0
        %664 = vperm.xlu0 %663, %v658
        %v665 = vpop.permute.xlu0 %664
        %668 = vset.pattern.permute.xlu0 0
        %669 = vperm.xlu0 %668, %v659
        %v670 = vpop.permute.xlu0 %669
        %673 = vset.pattern.permute.xlu0 0
        %674 = vperm.xlu0 %673, %v660
        %v675 = vpop.permute.xlu0 %674
        %678 = vset.pattern.permute.xlu0 0
        %679 = vperm.xlu0 %678, %v661
        %v680 = vpop.permute.xlu0 %679
        %v682 = vadd.f32 %v650, %v665
        %v683 = vadd.f32 %v651, %v665
        %v684 = vadd.f32 %v652, %v670
        %v685 = vadd.f32 %v653, %v670
        %v686 = vadd.f32 %v654, %v675
        %v687 = vadd.f32 %v655, %v675
        %v688 = vadd.f32 %v656, %v680
        %v689 = vadd.f32 %v657, %v680
        %690 = vst [vmem:[%s163] sm:$0xff] %v682
        %691 = vst [vmem:[%s163 + $0x8] sm:$0xff] %v683
        %692 = vst [vmem:[%s163 + $0x10] sm:$0xff] %v684
        %693 = vst [vmem:[%s163 + $0x18] sm:$0xff] %v685
        %694 = vst [vmem:[%s163 + $0x20] sm:$0xff] %v686
        %695 = vst [vmem:[%s163 + $0x28] sm:$0xff] %v687
        %696 = vst [vmem:[%s163 + $0x30] sm:$0xff] %v688
        %697 = vst [vmem:[%s163 + $0x38] sm:$0xff] %v689
        %s698 = sand.u32 %s93, 1
        %s699 = scalar_lea.sflag [#allocation3], %s698
        %s700 = sand.u32 %s93, 1
        %s701 = smul.addr %s700, 64
        %s702 = scalar_lea.vmem [#allocation2], %s701
        // Predicated region
        $region33: #{tpu_custom_call.1} parent=31 // pred_check
          %p703 = pneg %p103
        $region34: #{tpu_custom_call.1} parent=31 // pred_check_branch
          %705 = sbr.rel (%p703) target = $region36
        $region35: #{tpu_custom_call.1} parent=31 // pred_region
          %s707 = ssub.s32 1024, 1024
          %708 = vsyncadd %s699, %s707
          %s709 = smul.addr %s17, 8
          %s710 = smul.addr %s709, 128
          %s711 = scalar_lea.hbm %s3, %s710
          %s712 = sshll.u32 %s702, 4
          %s713 = int_to_ptr.vmem [resolvable:$true] %s712
          %718 = dma.vmem_to_hbm [thread:$0]  %s713, 1024, %s711, %s699, 256, 256, 16
        $region36: #{tpu_custom_call.1} parent=31 // pred_fallthru
          _
      $region32: #{tpu_custom_call.1} parent=5 // pred_fallthru
        _
      %p719 = scmp.le.s32.totalorder 2, %s12
      // Predicated region
      $region37: #{tpu_custom_call.1} parent=5 // pred_check
        %p720 = pneg %p719
      $region38: #{tpu_custom_call.1} parent=5 // pred_check_branch
        %722 = sbr.rel (%p720) target = $region40
      $region39: #{tpu_custom_call.1} parent=5 // pred_region
        %s723 = ssub.s32 %s12, 2
        // Predicated region
        $region41: #{tpu_custom_call.1} parent=39 // pred_check
          %p724 = pneg %p109
        $region42: #{tpu_custom_call.1} parent=39 // pred_check_branch
          %726 = sbr.rel (%p724) target = $region44
        $region43: #{tpu_custom_call.1} parent=39 // pred_region
          %s727 = sand.u32 %s94, 1
          %s728 = scalar_lea.sflag [#allocation3], %s727
          %s729 = sand.u32 %s94, 1
          %s730 = smul.addr %s729, 64
          %s731 = scalar_lea.vmem [#allocation2], %s730
          %732 = dma.done %s728, 1024
        $region44: #{tpu_custom_call.1} parent=39 // pred_fallthru
          _
      $region40: #{tpu_custom_call.1} parent=5 // pred_fallthru
        _
    $region6: #{tpu_custom_call.1} parent=1 // loop_footer
      %s16 = sadd.s32 1, %s12
    $region7: #{tpu_custom_call.1} parent=1 // loop_footer_branch
      %11 = sbr.rel target = $region3
    $region8: #{tpu_custom_call.1} parent=1 // loop_exit
      _
    %733 = vsyncpa [#allocation3], 1
    %s734 = scalar_lea.sflag [#allocation3], 1
    %735 = vsyncpa %s734, 1

</llo_original>
